<compile_context>
chip_gen: v6e
topology: v6e:2x2x1
jax: 0.10.0
libtpu: 0.0.40
codegen_flags: <defaults>
</compile_context>

<pallas_src>
import functools
import math

import jax
import jax.numpy as jnp
from jax.experimental import pallas as pl
from jax.experimental.pallas import tpu as pltpu

_LANE = 128
_MIB = 1024 * 1024
_VALID_ACTS = ("relu", "tanh", "sigmoid", None)


def _round_up(x, m):
    return ((x + m - 1) // m) * m


def _vmem_capacity_bytes():
    try:
        return int(pltpu.get_tpu_info().vmem_capacity_bytes)
    except Exception:
        return 64 * _MIB  # conservative fallback (v7x per-core VMEM)


def _apply_act(x, activation):
    if activation == "relu":
        return jnp.maximum(x, 0.0)
    if activation == "tanh":
        return jnp.tanh(x)
    if activation == "sigmoid":
        return jax.nn.sigmoid(x)
    return x  # identity (activation is None)


# ---------------------------------------------------------------------------
# Kernels
# ---------------------------------------------------------------------------
def _project_kernel(x_ref, w_ref, h_ref):
    # h_tile = x_tile @ W0   (done once, before the first GCN block)
    h_ref[...] = jnp.dot(
        x_ref[...], w_ref[...], preferred_element_type=jnp.float32
    ).astype(h_ref.dtype)


def _gcn_fused_kernel(adj_ref, h_ref, w_next_ref, out_ref, hn_ref, acc_ref, *,
                      activation, compute_dtype):
    # grid = (row_tiles [parallel], k_tiles [arbitrary])
    # adj_ref : (tm, tk)      bf16 adjacency tile
    # h_ref   : (tk, D_in)    K-chunk of the already-projected features x @ W
    # w_next  : (D_in, D_nxt) resident weight of the NEXT block
    # out_ref : (tm, D_in)    f32 this block's output tile (written on last k)
    # hn_ref  : (tm, D_nxt)   fused epilogue: next block's projection
    # acc_ref : (tm, D_in)    f32 accumulator scratch
    k = pl.program_id(1)

    @pl.when(k == 0)
    def _():
        acc_ref[...] = jnp.zeros_like(acc_ref)

    acc_ref[...] += jnp.dot(adj_ref[...], h_ref[...],
                            preferred_element_type=jnp.float32)

    @pl.when(k == pl.num_programs(1) - 1)
    def _():
        o = _apply_act(acc_ref[...], activation)
        out_ref[...] = o.astype(out_ref.dtype)
        hn_ref[...] = jnp.dot(
            o.astype(compute_dtype), w_next_ref[...],
            preferred_element_type=jnp.float32).astype(hn_ref.dtype)


def _gcn_last_kernel(adj_ref, h_ref, out_ref, acc_ref, *, activation):
    k = pl.program_id(1)

    @pl.when(k == 0)
    def _():
        acc_ref[...] = jnp.zeros_like(acc_ref)

    acc_ref[...] += jnp.dot(adj_ref[...], h_ref[...],
                            preferred_element_type=jnp.float32)

    @pl.when(k == pl.num_programs(1) - 1)
    def _():
        out_ref[...] = _apply_act(acc_ref[...], activation).astype(out_ref.dtype)


# ---------------------------------------------------------------------------
# Tile selection (generation-aware)
# ---------------------------------------------------------------------------
def _choose_tiles(n_pad, d_in, d_next, csz, budget):
    """Pick (tm, tk) multiples of 128 dividing n_pad that fit the VMEM budget."""

    def est(tm, tk):
        return (2 * tm * tk * csz           # adj tile, double-buffered
                + 2 * tk * d_in * csz       # h K-chunk, double-buffered
                + 2 * d_in * d_next * csz   # resident W_next
                + 2 * tm * d_in * 4         # f32 block output tile
                + 2 * tm * d_next * csz     # fused next-block projection tile
                + tm * d_in * 4)            # f32 accumulator scratch

    def pick_tk(tm):
        # Full residency when it fits (k-axis collapses to 1 step, features
        # are fetched once); otherwise largest multiple of 128 <= 4096 that
        # divides n_pad and fits the budget.
        if est(tm, n_pad) <= budget:
            return n_pad
        t = min(n_pad, 4096)
        while t > 128:
            if n_pad % t == 0 and est(tm, t) <= budget:
                return t
            t -= 128
        return 128

    # Prefer tm=256 (fills the 256-wide MXU M dimension on v6e/v7x) when it
    # divides n_pad, still leaves >= 2 row steps, and fits the budget.
    tm = 256 if (n_pad % 256 == 0 and n_pad >= 512) else 128
    tk = pick_tk(tm)
    if tm == 256 and est(tm, tk) > budget:
        tm = 128
        tk = pick_tk(tm)
    return tm, tk, est(tm, tk)


# ---------------------------------------------------------------------------
# pallas_call wrappers
# ---------------------------------------------------------------------------
def _project(x_p, w_p, *, tm, compute_dtype, vmem_limit_bytes):
    Np, Fp = x_p.shape
    Dp = w_p.shape[1]
    csz = jnp.dtype(compute_dtype).itemsize
    ce = pl.CostEstimate(
        flops=2 * Np * Fp * Dp,
        transcendentals=0,
        bytes_accessed=(Np * Fp + Fp * Dp + Np * Dp) * csz,
    )
    return pl.pallas_call(
        _project_kernel,
        out_shape=jax.ShapeDtypeStruct((Np, Dp), compute_dtype),
        grid_spec=pltpu.PrefetchScalarGridSpec(
            num_scalar_prefetch=0,
            grid=(Np // tm,),
            in_specs=[
                pl.BlockSpec((tm, Fp), lambda i: (i, 0)),
                pl.BlockSpec((Fp, Dp), lambda i: (0, 0)),
            ],
            out_specs=pl.BlockSpec((tm, Dp), lambda i: (i, 0)),
        ),
        compiler_params=pltpu.CompilerParams(
            dimension_semantics=("parallel",),
            vmem_limit_bytes=int(vmem_limit_bytes)),
        cost_estimate=ce,
    )(x_p, w_p)


def gcn_block(adj_p, h_p, w_next_p, activation, *, tm, tk, compute_dtype,
              vmem_limit_bytes, out_dtype=jnp.float32):
    """One CGCN block on padded operands.

    Returns (out, h_next) where out = act(adj @ h) and, if w_next_p is given,
    h_next = out @ w_next_p (the fused projection for the following block).
    """
    Np = adj_p.shape[0]
    Din = h_p.shape[1]
    csz = jnp.dtype(compute_dtype).itemsize
    osz = jnp.dtype(out_dtype).itemsize
    n_trans = Np * Din if activation in ("tanh", "sigmoid") else 0
    grid = (Np // tm, Np // tk)
    h_reads = 1 if tk == Np else (Np // tm)  # h re-read once per row tile if K-tiled
    cparams = pltpu.CompilerParams(
        dimension_semantics=("parallel", "arbitrary"),
        vmem_limit_bytes=int(vmem_limit_bytes),
    )

    if w_next_p is None:
        ce = pl.CostEstimate(
            flops=2 * Np * Np * Din,
            transcendentals=n_trans,
            bytes_accessed=Np * Np * csz + h_reads * Np * Din * csz
            + Np * Din * osz,
        )
        out = pl.pallas_call(
            functools.partial(_gcn_last_kernel, activation=activation),
            out_shape=jax.ShapeDtypeStruct((Np, Din), out_dtype),
            grid_spec=pltpu.PrefetchScalarGridSpec(
                num_scalar_prefetch=0,
                grid=grid,
                in_specs=[
                    pl.BlockSpec((tm, tk), lambda i, k: (i, k)),   # adj tile
                    pl.BlockSpec((tk, Din), lambda i, k: (k, 0)),  # h K-chunk
                ],
                out_specs=pl.BlockSpec((tm, Din), lambda i, k: (i, 0)),
                scratch_shapes=[pltpu.VMEM((tm, Din), jnp.float32)],
            ),
            compiler_params=cparams,
            cost_estimate=ce,
        )(adj_p, h_p)
        return out, None

    Dnext = w_next_p.shape[1]
    ce = pl.CostEstimate(
        flops=2 * Np * Np * Din + 2 * Np * Din * Dnext,
        transcendentals=n_trans,
        bytes_accessed=Np * Np * csz + h_reads * Np * Din * csz
        + Din * Dnext * csz + Np * Dnext * csz + Np * Din * osz,
    )
    out, h_next = pl.pallas_call(
        functools.partial(_gcn_fused_kernel, activation=activation,
                          compute_dtype=compute_dtype),
        out_shape=(
            jax.ShapeDtypeStruct((Np, Din), out_dtype),
            jax.ShapeDtypeStruct((Np, Dnext), compute_dtype),
        ),
        grid_spec=pltpu.PrefetchScalarGridSpec(
            num_scalar_prefetch=0,
            grid=grid,
            in_specs=[
                pl.BlockSpec((tm, tk), lambda i, k: (i, k)),       # adj tile
                pl.BlockSpec((tk, Din), lambda i, k: (k, 0)),      # h K-chunk
                pl.BlockSpec((Din, Dnext), lambda i, k: (0, 0)),   # W_next
            ],
            out_specs=(
                pl.BlockSpec((tm, Din), lambda i, k: (i, 0)),      # block out
                pl.BlockSpec((tm, Dnext), lambda i, k: (i, 0)),    # next h
            ),
            scratch_shapes=[pltpu.VMEM((tm, Din), jnp.float32)],
        ),
        compiler_params=cparams,
        cost_estimate=ce,
    )(adj_p, h_p, w_next_p)
    return out, h_next


# ---------------------------------------------------------------------------
# Parameter init (matches torch xavier_uniform_ with calculate_gain(act))
# ---------------------------------------------------------------------------
def _calculate_gain(activation):
    if activation == "relu":
        return math.sqrt(2.0)
    if activation == "tanh":
        return 5.0 / 3.0
    return 1.0  # sigmoid / None


def xavier_uniform(key, fan_out, fan_in, gain):
    # torch Linear weight is (out, in); returned pre-transposed as (in, out).
    a = gain * math.sqrt(6.0 / (fan_in + fan_out))
    w = jax.random.uniform(key, (fan_out, fan_in), jnp.float32, -a, a)
    return w.T


def make_sgalign_params(key, gcn_num_blocks, input_dim, output_dim, activation):
    gain = _calculate_gain(activation)
    params = []
    in_dim = input_dim
    for _ in range(gcn_num_blocks):
        key, sub = jax.random.split(key)
        params.append(xavier_uniform(sub, output_dim, in_dim, gain))
        in_dim = output_dim
    return params


# ---------------------------------------------------------------------------
# SGAlign forward: returns [input, gcn1_out, gcn2_out, ...]
# ---------------------------------------------------------------------------
def _pad2(a, rows, cols, dtype):
    out = jnp.zeros((rows, cols), dtype)
    return out.at[: a.shape[0], : a.shape[1]].set(a.astype(dtype))


def sgalign_forward(adj, s_feature, t_feature, params, activation, net="s",
                    *, compute_dtype=jnp.bfloat16):
    if activation not in _VALID_ACTS:
        raise ValueError(f"unsupported activation: {activation!r}")
    x = s_feature if net == "s" else t_feature
    if not params:
        return [x]

    N, F_in = x.shape
    D_out = params[0].shape[1]
    csz = jnp.dtype(compute_dtype).itemsize

    # Padding: N_pad is exactly round_up(N, 128) (tm/tk are chosen as
    # divisors of it), feature dims are padded to 128 lanes so every store is
    # lane-dense.  Zero padding keeps the *sliced* results exact: padded
    # weight rows / adjacency columns are zero, so any nonzero values that an
    # activation (e.g. sigmoid(0)=0.5) introduces in padded rows/columns never
    # reach the real entries.
    N_pad = _round_up(N, _LANE)
    F_pad = _round_up(F_in, _LANE)
    D_pad = _round_up(D_out, _LANE)

    # Generation-aware VMEM budget (v7x: 64 MiB physical -> ~48 MiB budget;
    # v5e/v6e: 128 MiB -> ~96 MiB budget).
    capacity = _vmem_capacity_bytes()
    budget = (capacity * 3) // 4
    tm, tk, est_gcn = _choose_tiles(N_pad, D_pad, D_pad, csz, budget)
    est_proj = 2 * tm * F_pad * csz + 2 * F_pad * D_pad * csz + 2 * tm * D_pad * csz
    vmem_limit = int(min(budget, max(32 * _MIB, max(est_gcn, est_proj) + 16 * _MIB)))

    # Padded bf16 operands.
    adj_p = _pad2(adj, N_pad, N_pad, compute_dtype)
    x_p = _pad2(x, N_pad, F_pad, compute_dtype)
    ws_p = []
    for i, w in enumerate(params):
        rows = F_pad if i == 0 else D_pad
        ws_p.append(_pad2(w, rows, D_pad, compute_dtype))

    # h_0 = x @ W_0 (hoisted out of the adjacency row-tile loop).
    h = _project(x_p, ws_p[0], tm=tm, compute_dtype=compute_dtype,
                 vmem_limit_bytes=vmem_limit)

    outputs = [x]
    for i in range(len(params)):
        w_next = ws_p[i + 1] if i + 1 < len(params) else None
        out_p, h = gcn_block(adj_p, h, w_next, activation, tm=tm, tk=tk,
                             compute_dtype=compute_dtype,
                             vmem_limit_bytes=vmem_limit)
        outputs.append(out_p[:N, :D_out])  # strip lane/row padding
    return outputs


# ---------------------------------------------------------------------------
if __name__ == "__main__":
    key = jax.random.PRNGKey(0)

    # Small synthetic problem (non-multiples of 8/128 to exercise padding).
    N = 24              # number of nodes
    INPUT_DIM = 48      # s_feature.shape[1]
    OUTPUT_DIM = 32     # CGCN output dim
    NUM_BLOCKS = 3
    ACTIVATION = "relu"

    k_adj, k_s, k_t, k_params = jax.random.split(key, 4)

    # symmetric row-normalized adjacency (dense, synthetic)
    a = jax.random.uniform(k_adj, (N, N), jnp.float32)
    adj = (a + a.T) * 0.5 + jnp.eye(N, dtype=jnp.float32)
    adj = adj / jnp.sum(adj, axis=1, keepdims=True)

    s_feature = jax.random.normal(k_s, (N, INPUT_DIM), jnp.float32)
    t_feature = jax.random.normal(k_t, (N, INPUT_DIM), jnp.float32)

    params = make_sgalign_params(
        k_params, NUM_BLOCKS, INPUT_DIM, OUTPUT_DIM, ACTIVATION)

    outputs = sgalign_forward(adj, s_feature, t_feature, params,
                              ACTIVATION, net="s")
    outputs = [jax.block_until_ready(o) for o in outputs]

    # --- Reference 1: mirrors the kernel's bf16-input / f32-accumulate math.
    cd = jnp.bfloat16
    adj_c = adj.astype(cd)
    ref = [s_feature]
    h = jnp.dot(s_feature.astype(cd), params[0].astype(cd),
                preferred_element_type=jnp.float32).astype(cd)
    for i in range(NUM_BLOCKS):
        o = jnp.maximum(
            jnp.dot(adj_c, h, preferred_element_type=jnp.float32), 0.0)
        ref.append(o)
        if i + 1 < NUM_BLOCKS:
            h = jnp.dot(o.astype(cd), params[i + 1].astype(cd),
                        preferred_element_type=jnp.float32).astype(cd)

    # --- Reference 2: pure float32 (module semantics), looser tolerance.
    ref32 = [s_feature]
    emb = s_feature
    for w in params:
        emb = jnp.maximum(adj @ (emb @ w), 0.0)
        ref32.append(emb)

    for o, r, r32 in zip(outputs, ref, ref32):
        assert o.shape == r.shape == r32.shape
        assert jnp.allclose(o, r, atol=5e-3, rtol=5e-3)
        assert jnp.allclose(o, r32, atol=5e-2, rtol=5e-2)

    print("KERNEL_OK")
</pallas_src>

<mosaic_0001>
module attributes {stable_mosaic.version = 11 : i64} {
  func.func @_project_kernel(%arg0: i32, %arg1: memref<128x128xbf16, #tpu.memory_space<vmem>>, %arg2: memref<128x128xbf16, #tpu.memory_space<vmem>>, %arg3: memref<128x128xbf16, #tpu.memory_space<vmem>>) attributes {dimension_semantics = [#tpu.dimension_semantics<parallel>], iteration_bounds = array<i64: 1>, scalar_prefetch = 0 : i64, scratch_operands = 0 : i64, tpu.core_type = #tpu.core_type<tc>, window_params = [{transform_indices = @transform_0, window_bounds = array<i64: 128, 128>}, {pipeline_mode = #tpu.pipeline_mode<synchronous>, transform_indices = @transform_1, window_bounds = array<i64: 128, 128>}, {transform_indices = @transform_2, window_bounds = array<i64: 128, 128>}]} {
    %c0 = arith.constant 0 : index
    %c0_0 = arith.constant 0 : index
    %0 = vector.load %arg1[%c0, %c0_0] : memref<128x128xbf16, #tpu.memory_space<vmem>>, vector<128x128xbf16>
    %c0_1 = arith.constant 0 : index
    %c0_2 = arith.constant 0 : index
    %1 = vector.load %arg2[%c0_1, %c0_2] : memref<128x128xbf16, #tpu.memory_space<vmem>>, vector<128x128xbf16>
    %cst = arith.constant dense<0.000000e+00> : vector<128x128xf32>
    %2 = tpu.matmul %0, %1, %cst {dimension_numbers = #tpu.dot_dimension_numbers<[1], [0], [0], [1], [0, 0, 1, 1], [], []>} : vector<128x128xbf16>, vector<128x128xbf16>, vector<128x128xf32> -> vector<128x128xf32>
    %3 = arith.truncf %2 : vector<128x128xf32> to vector<128x128xbf16>
    %c0_3 = arith.constant 0 : index
    %c0_4 = arith.constant 0 : index
    %4 = vector.load %arg3[%c0_3, %c0_4] : memref<128x128xbf16, #tpu.memory_space<vmem>>, vector<128x128xbf16>
    tpu.vector_store %arg3[%c0_3, %c0_4], %3 {strides = array<i32>} : memref<128x128xbf16, #tpu.memory_space<vmem>>, vector<128x128xbf16>,
    return
  }
  func.func @transform_0(%arg0: i32) -> (i32, i32) {
    %c0_i32 = arith.constant 0 : i32
    %c0_i32_0 = arith.constant 0 : i32
    return %arg0, %c0_i32 : i32, i32
  }
  func.func @transform_1(%arg0: i32) -> (i32, i32) {
    %c0_i32 = arith.constant 0 : i32
    %c0_i32_0 = arith.constant 0 : i32
    %c0_i32_1 = arith.constant 0 : i32
    return %c0_i32, %c0_i32_0 : i32, i32
  }
  func.func @transform_2(%arg0: i32) -> (i32, i32) {
    %c0_i32 = arith.constant 0 : i32
    %c0_i32_0 = arith.constant 0 : i32
    return %arg0, %c0_i32 : i32, i32
  }
}

</mosaic_0001>

<llo_original>
// kernel: tpu_custom_call.1
$region0: #{tpu_custom_call.1}
  #allocation0 [shape = 'u32[]', space=smem, size = 0x4, offset = 0x4, fixed_abs, tag = 'smem constant byte address 0x4 - core index']
  #allocation1 [shape = 'u32[144,128]{1,0:T(1,128)}', space=vmem, size = 0x12000, scoped, tag = 'internal scratch']
  %s0 = inlined_call_operand.hbm [shape: bf16[128,128], index: 0, kind: input, shape index: {}]
  %s1 = inlined_call_operand.hbm [shape: bf16[128,128], index: 1, kind: input, shape index: {}]
  %s2 = inlined_call_operand.hbm [shape: bf16[128,128], index: 2, kind: output, shape index: {}]
  %s3 = sld [smem:[#allocation0]]
  $region26: #{tpu_custom_call.1} parent=0
    _
  %s5 = ssub.s32 1, %s3
  %s6 = scalar_select 0, %s5, %s3
  $region1: #{tpu_custom_call.1} parent=0
    #allocation2 [shape = 'u8[32768]{0}', space=vmem, size = 0x8000, scoped, tag = 'input window, operand 0, single buffered']
    #allocation3 [shape = 's32[1]{0}', space=sflag, size = 0x4, scoped, tag = 'scoped memory for tpu_custom_call.1']
    #allocation4 [shape = 's32[1]{0}', space=sflag, size = 0x4, scoped, tag = 'scoped memory for tpu_custom_call.1']
    #allocation5 [shape = 'u8[32768]{0}', space=vmem, size = 0x8000, scoped, tag = 'input window, operand 1, single buffered']
    #allocation6 [shape = 's32[1]{0}', space=sflag, size = 0x4, scoped, tag = 'scoped memory for tpu_custom_call.1']
    #allocation7 [shape = 'u8[32768]{0}', space=vmem, size = 0x8000, scoped, tag = 'output window, operand 0, single buffered']
    %7 = vsyncpa [#allocation3], 0
    %8 = vsyncpa [#allocation6], 0
    %9 = vsyncpa [#allocation4], 0
    // Predicated region
    $region2: #{tpu_custom_call.1} parent=1 // pred_check
      _
    $region3: #{tpu_custom_call.1} parent=1 // pred_check_branch
      %11 = sbr.rel (0) target = $region5
    $region4: #{tpu_custom_call.1} parent=1 // pred_region
      %s13 = ssub.s32 1024, 1024
      %14 = vsyncadd [#allocation3], %s13
      %s15 = sshll.u32 [#allocation2], 4
      %s16 = int_to_ptr.vmem [resolvable:$true] %s15
      %21 = dma.hbm_to_vmem [thread:$0]  %s0, 1024, %s16, [#allocation3], 64, 64, 4
    $region5: #{tpu_custom_call.1} parent=1 // pred_fallthru
      _
    // Predicated region
    $region6: #{tpu_custom_call.1} parent=1 // pred_check
      _
    $region7: #{tpu_custom_call.1} parent=1 // pred_check_branch
      %23 = sbr.rel (0) target = $region9
    $region8: #{tpu_custom_call.1} parent=1 // pred_region
      %s25 = ssub.s32 1024, 1024
      %26 = vsyncadd [#allocation6], %s25
      %s27 = sshll.u32 [#allocation5], 4
      %s28 = int_to_ptr.vmem [resolvable:$true] %s27
      %33 = dma.hbm_to_vmem [thread:$0]  %s1, 1024, %s28, [#allocation6], 64, 64, 4
    $region9: #{tpu_custom_call.1} parent=1 // pred_fallthru
      _
    // Predicated region
    $region10: #{tpu_custom_call.1} parent=1 // pred_check
      _
    $region11: #{tpu_custom_call.1} parent=1 // pred_check_branch
      %35 = sbr.rel (0) target = $region13
    $region12: #{tpu_custom_call.1} parent=1 // pred_region
      %36 = dma.done [#allocation3], 1024
    $region13: #{tpu_custom_call.1} parent=1 // pred_fallthru
      _
    // Predicated region
    $region14: #{tpu_custom_call.1} parent=1 // pred_check
      _
    $region15: #{tpu_custom_call.1} parent=1 // pred_check_branch
      %38 = sbr.rel (0) target = $region17
    $region16: #{tpu_custom_call.1} parent=1 // pred_region
      %39 = dma.done [#allocation6], 1024
    $region17: #{tpu_custom_call.1} parent=1 // pred_fallthru
      _
    %v41 = vld [vmem:[#allocation2] sm:$0xf]
    %v42 = vld [vmem:[#allocation2 + $0x4] sm:$0xf]
    %v43 = vld [vmem:[#allocation2 + $0x8] sm:$0xf]
    %v44 = vld [vmem:[#allocation2 + $0xc] sm:$0xf]
    %v45 = vld [vmem:[#allocation2 + $0x10] sm:$0xf]
    %v46 = vld [vmem:[#allocation2 + $0x14] sm:$0xf]
    %v47 = vld [vmem:[#allocation2 + $0x18] sm:$0xf]
    %v48 = vld [vmem:[#allocation2 + $0x1c] sm:$0xf]
    %v49 = vld [vmem:[#allocation2 + $0x20] sm:$0xf]
    %v50 = vld [vmem:[#allocation2 + $0x24] sm:$0xf]
    %v51 = vld [vmem:[#allocation2 + $0x28] sm:$0xf]
    %v52 = vld [vmem:[#allocation2 + $0x2c] sm:$0xf]
    %v53 = vld [vmem:[#allocation2 + $0x30] sm:$0xf]
    %v54 = vld [vmem:[#allocation2 + $0x34] sm:$0xf]
    %v55 = vld [vmem:[#allocation2 + $0x38] sm:$0xf]
    %v56 = vld [vmem:[#allocation2 + $0x3c] sm:$0xf]
    %v57 = vld [vmem:[#allocation5] sm:$0xf]
    %v58 = vld [vmem:[#allocation5 + $0x4] sm:$0xf]
    %v59 = vld [vmem:[#allocation5 + $0x8] sm:$0xf]
    %v60 = vld [vmem:[#allocation5 + $0xc] sm:$0xf]
    %v61 = vld [vmem:[#allocation5 + $0x10] sm:$0xf]
    %v62 = vld [vmem:[#allocation5 + $0x14] sm:$0xf]
    %v63 = vld [vmem:[#allocation5 + $0x18] sm:$0xf]
    %v64 = vld [vmem:[#allocation5 + $0x1c] sm:$0xf]
    %v65 = vld [vmem:[#allocation5 + $0x20] sm:$0xf]
    %v66 = vld [vmem:[#allocation5 + $0x24] sm:$0xf]
    %v67 = vld [vmem:[#allocation5 + $0x28] sm:$0xf]
    %v68 = vld [vmem:[#allocation5 + $0x2c] sm:$0xf]
    %v69 = vld [vmem:[#allocation5 + $0x30] sm:$0xf]
    %v70 = vld [vmem:[#allocation5 + $0x34] sm:$0xf]
    %v71 = vld [vmem:[#allocation5 + $0x38] sm:$0xf]
    %v72 = vld [vmem:[#allocation5 + $0x3c] sm:$0xf]
    %v89 = vunpack.c.l.b16 %v41
    %v90 = vunpack.c.l.b16 %v42
    %v91 = vunpack.c.l.b16 %v43
    %v92 = vunpack.c.l.b16 %v44
    %v93 = vunpack.c.l.b16 %v45
    %v94 = vunpack.c.l.b16 %v46
    %v95 = vunpack.c.l.b16 %v47
    %v96 = vunpack.c.l.b16 %v48
    %v97 = vunpack.c.l.b16 %v49
    %v98 = vunpack.c.l.b16 %v50
    %v99 = vunpack.c.l.b16 %v51
    %v100 = vunpack.c.l.b16 %v52
    %v101 = vunpack.c.l.b16 %v53
    %v102 = vunpack.c.l.b16 %v54
    %v103 = vunpack.c.l.b16 %v55
    %v104 = vunpack.c.l.b16 %v56
    %v105 = vpack.c.b16 %v90, %v89
    %v106 = vpack.c.b16 %v92, %v91
    %v107 = vpack.c.b16 %v94, %v93
    %v108 = vpack.c.b16 %v96, %v95
    %v109 = vpack.c.b16 %v98, %v97
    %v110 = vpack.c.b16 %v100, %v99
    %v111 = vpack.c.b16 %v102, %v101
    %v112 = vpack.c.b16 %v104, %v103
    %v137 = vunpack.c.l.b16 %v57
    %v138 = vunpack.c.l.b16 %v58
    %v139 = vunpack.c.l.b16 %v59
    %v140 = vunpack.c.l.b16 %v60
    %v141 = vunpack.c.l.b16 %v61
    %v142 = vunpack.c.l.b16 %v62
    %v143 = vunpack.c.l.b16 %v63
    %v144 = vunpack.c.l.b16 %v64
    %v145 = vunpack.c.l.b16 %v65
    %v146 = vunpack.c.l.b16 %v66
    %v147 = vunpack.c.l.b16 %v67
    %v148 = vunpack.c.l.b16 %v68
    %v149 = vunpack.c.l.b16 %v69
    %v150 = vunpack.c.l.b16 %v70
    %v151 = vunpack.c.l.b16 %v71
    %v152 = vunpack.c.l.b16 %v72
    %v153 = vpack.c.b16 %v138, %v137
    %v154 = vpack.c.b16 %v140, %v139
    %v155 = vpack.c.b16 %v142, %v141
    %v156 = vpack.c.b16 %v144, %v143
    %v157 = vpack.c.b16 %v146, %v145
    %v158 = vpack.c.b16 %v148, %v147
    %v159 = vpack.c.b16 %v150, %v149
    %v160 = vpack.c.b16 %v152, %v151
    %169 = vmatprep.subr.bf16.mxu0 0
    %170 = vmatpush1.bf16.msra.mxu0 %v160
    %171 = vmatprep.subr.bf16.mxu0 0
    %172 = vmatpush1.bf16.msra.mxu0 %v159
    %173 = vmatprep.subr.bf16.mxu0 0
    %174 = vmatpush1.bf16.msra.mxu0 %v158
    %175 = vmatprep.subr.bf16.mxu0 0
    %176 = vmatpush1.bf16.msra.mxu0 %v157
    %177 = vmatprep.subr.bf16.mxu0 0
    %178 = vmatpush1.bf16.msra.mxu0 %v156
    %179 = vmatprep.subr.bf16.mxu0 0
    %180 = vmatpush1.bf16.msra.mxu0 %v155
    %181 = vmatprep.subr.bf16.mxu0 0
    %182 = vmatpush1.bf16.msra.mxu0 %v154
    %183 = vmatprep.subr.bf16.mxu0 0
    %184 = vmatpush1.bf16.msra.mxu0 %v153
    %185 = vmatprep.subr.bf16.mxu0 0
    %186 = vmatpush2.bf16.msra.mxu0 0
    %187 = vmatprep.subr.bf16.mxu0 0
    %188 = vmatpush2.bf16.msra.mxu0 0
    %189 = vmatprep.subr.bf16.mxu0 0
    %190 = vmatpush2.bf16.msra.mxu0 0
    %191 = vmatprep.subr.bf16.mxu0 0
    %192 = vmatpush2.bf16.msra.mxu0 0
    %193 = vmatprep.subr.bf16.mxu0 0
    %194 = vmatpush2.bf16.msra.mxu0 0
    %195 = vmatprep.subr.bf16.mxu0 0
    %196 = vmatpush2.bf16.msra.mxu0 0
    %197 = vmatprep.subr.bf16.mxu0 0
    %198 = vmatpush2.bf16.msra.mxu0 0
    %199 = vmatprep.subr.bf16.mxu0 0
    %200 = vmatpush2.bf16.msra.mxu0 0
    %201 = vmatprep.mubr.bf16.mxu0 0
    %202 = vmatmul.mubr.bf16.gmra.mxu0 %v105
    %v203 = vpop.f32.mrf.mxu0
    %v204 = vadd.f32 0.0, %v203
    %v205 = vpop.f32.mrf.mxu0
    %v206 = vpop.f32.mrf.mxu0
    %v207 = vadd.f32 0.0, %v206
    %v208 = vpop.f32.mrf.mxu0
    %209 = vmatprep.mubr.bf16.mxu0 0
    %210 = vmatmul.mubr.bf16.gmra.mxu0 %v106
    %v211 = vpop.f32.mrf.mxu0
    %v212 = vadd.f32 0.0, %v211
    %v213 = vpop.f32.mrf.mxu0
    %v214 = vpop.f32.mrf.mxu0
    %v215 = vadd.f32 0.0, %v214
    %v216 = vpop.f32.mrf.mxu0
    %217 = vmatprep.mubr.bf16.mxu0 0
    %218 = vmatmul.mubr.bf16.gmra.mxu0 %v107
    %v219 = vpop.f32.mrf.mxu0
    %v220 = vadd.f32 0.0, %v219
    %v221 = vpop.f32.mrf.mxu0
    %v222 = vpop.f32.mrf.mxu0
    %v223 = vadd.f32 0.0, %v222
    %v224 = vpop.f32.mrf.mxu0
    %225 = vmatprep.mubr.bf16.mxu0 0
    %226 = vmatmul.mubr.bf16.gmra.mxu0 %v108
    %v227 = vpop.f32.mrf.mxu0
    %v228 = vadd.f32 0.0, %v227
    %v229 = vpop.f32.mrf.mxu0
    %v230 = vpop.f32.mrf.mxu0
    %v231 = vadd.f32 0.0, %v230
    %v232 = vpop.f32.mrf.mxu0
    %233 = vmatprep.mubr.bf16.mxu0 0
    %234 = vmatmul.mubr.bf16.gmra.mxu0 %v109
    %v235 = vpop.f32.mrf.mxu0
    %v236 = vadd.f32 0.0, %v235
    %v237 = vpop.f32.mrf.mxu0
    %v238 = vpop.f32.mrf.mxu0
    %v239 = vadd.f32 0.0, %v238
    %v240 = vpop.f32.mrf.mxu0
    %241 = vmatprep.mubr.bf16.mxu0 0
    %242 = vmatmul.mubr.bf16.gmra.mxu0 %v110
    %v243 = vpop.f32.mrf.mxu0
    %v244 = vadd.f32 0.0, %v243
    %v245 = vpop.f32.mrf.mxu0
    %v246 = vpop.f32.mrf.mxu0
    %v247 = vadd.f32 0.0, %v246
    %v248 = vpop.f32.mrf.mxu0
    %249 = vmatprep.mubr.bf16.mxu0 0
    %250 = vmatmul.mubr.bf16.gmra.mxu0 %v111
    %v251 = vpop.f32.mrf.mxu0
    %v252 = vadd.f32 0.0, %v251
    %v253 = vpop.f32.mrf.mxu0
    %v254 = vpop.f32.mrf.mxu0
    %v255 = vadd.f32 0.0, %v254
    %v256 = vpop.f32.mrf.mxu0
    %257 = vmatprep.mubr.bf16.mxu0 0
    %258 = vmatmul.mubr.bf16.gmra.mxu0 %v112
    %v259 = vpop.f32.mrf.mxu0
    %v260 = vadd.f32 0.0, %v259
    %v261 = vpop.f32.mrf.mxu0
    %v262 = vpop.f32.mrf.mxu0
    %v263 = vadd.f32 0.0, %v262
    %v264 = vpop.f32.mrf.mxu0
    %265 = vdwg.mxu0
    %v266 = vpack.c.bf16 %v207, %v204
    %v267 = vpack.c.bf16 %v215, %v212
    %v268 = vpack.c.bf16 %v223, %v220
    %v269 = vpack.c.bf16 %v231, %v228
    %v270 = vpack.c.bf16 %v239, %v236
    %v271 = vpack.c.bf16 %v247, %v244
    %v272 = vpack.c.bf16 %v255, %v252
    %v273 = vpack.c.bf16 %v263, %v260
    %v282 = vunpack.c.l.b16 %v266
    %v283 = vunpack.c.h.b16 %v266
    %v284 = vunpack.c.l.b16 %v267
    %v285 = vunpack.c.h.b16 %v267
    %v286 = vunpack.c.l.b16 %v268
    %v287 = vunpack.c.h.b16 %v268
    %v288 = vunpack.c.l.b16 %v269
    %v289 = vunpack.c.h.b16 %v269
    %v290 = vunpack.c.l.b16 %v270
    %v291 = vunpack.c.h.b16 %v270
    %v292 = vunpack.c.l.b16 %v271
    %v293 = vunpack.c.h.b16 %v271
    %v294 = vunpack.c.l.b16 %v272
    %v295 = vunpack.c.h.b16 %v272
    %v296 = vunpack.c.l.b16 %v273
    %v297 = vunpack.c.h.b16 %v273
    %v298 = vpack.c.b16 %v282, %v282
    %v299 = vpack.c.b16 %v283, %v283
    %v300 = vpack.c.b16 %v284, %v284
    %v301 = vpack.c.b16 %v285, %v285
    %v302 = vpack.c.b16 %v286, %v286
    %v303 = vpack.c.b16 %v287, %v287
    %v304 = vpack.c.b16 %v288, %v288
    %v305 = vpack.c.b16 %v289, %v289
    %v306 = vpack.c.b16 %v290, %v290
    %v307 = vpack.c.b16 %v291, %v291
    %v308 = vpack.c.b16 %v292, %v292
    %v309 = vpack.c.b16 %v293, %v293
    %v310 = vpack.c.b16 %v294, %v294
    %v311 = vpack.c.b16 %v295, %v295
    %v312 = vpack.c.b16 %v296, %v296
    %v313 = vpack.c.b16 %v297, %v297
    %330 = vst [vmem:[#allocation7] sm:$0xf] %v298
    %331 = vst [vmem:[#allocation7 + $0x4] sm:$0xf] %v299
    %332 = vst [vmem:[#allocation7 + $0x8] sm:$0xf] %v300
    %333 = vst [vmem:[#allocation7 + $0xc] sm:$0xf] %v301
    %334 = vst [vmem:[#allocation7 + $0x10] sm:$0xf] %v302
    %335 = vst [vmem:[#allocation7 + $0x14] sm:$0xf] %v303
    %336 = vst [vmem:[#allocation7 + $0x18] sm:$0xf] %v304
    %337 = vst [vmem:[#allocation7 + $0x1c] sm:$0xf] %v305
    %338 = vst [vmem:[#allocation7 + $0x20] sm:$0xf] %v306
    %339 = vst [vmem:[#allocation7 + $0x24] sm:$0xf] %v307
    %340 = vst [vmem:[#allocation7 + $0x28] sm:$0xf] %v308
    %341 = vst [vmem:[#allocation7 + $0x2c] sm:$0xf] %v309
    %342 = vst [vmem:[#allocation7 + $0x30] sm:$0xf] %v310
    %343 = vst [vmem:[#allocation7 + $0x34] sm:$0xf] %v311
    %344 = vst [vmem:[#allocation7 + $0x38] sm:$0xf] %v312
    %345 = vst [vmem:[#allocation7 + $0x3c] sm:$0xf] %v313
    // Predicated region
    $region18: #{tpu_custom_call.1} parent=1 // pred_check
      _
    $region19: #{tpu_custom_call.1} parent=1 // pred_check_branch
      %347 = sbr.rel (0) target = $region21
    $region20: #{tpu_custom_call.1} parent=1 // pred_region
      %s349 = ssub.s32 1024, 1024
      %350 = vsyncadd [#allocation4], %s349
      %s351 = sshll.u32 [#allocation7], 4
      %s352 = int_to_ptr.vmem [resolvable:$true] %s351
      %357 = dma.vmem_to_hbm [thread:$0]  %s352, 1024, %s2, [#allocation4], 64, 64, 4
    $region21: #{tpu_custom_call.1} parent=1 // pred_fallthru
      _
    // Predicated region
    $region22: #{tpu_custom_call.1} parent=1 // pred_check
      _
    $region23: #{tpu_custom_call.1} parent=1 // pred_check_branch
      %359 = sbr.rel (0) target = $region25
    $region24: #{tpu_custom_call.1} parent=1 // pred_region
      %360 = dma.done [#allocation4], 1024
    $region25: #{tpu_custom_call.1} parent=1 // pred_fallthru
      _
    %361 = vsyncpa [#allocation3], 1
    %362 = vsyncpa [#allocation6], 1
    %363 = vsyncpa [#allocation4], 1

</llo_original>
